<compile_context>
chip_gen: v7x
topology: tpu7x:2x2x1
jax: 0.10.0
libtpu: 0.0.40
codegen_flags: <defaults>
</compile_context>

<pallas_src>
import math

import jax
import jax.numpy as jnp
from jax import lax
from jax.experimental import pallas as pl
from jax.experimental.pallas import tpu as pltpu


# --------------------------------------------------------------------------
# Kernels
# --------------------------------------------------------------------------
def _masked_linear_kernel_1k(x_ref, w_ref, b_ref, o_ref):
    """Single K step: x_ref (tm, Inp) bf16, w_ref (Inp, tn) bf16 (pre-masked,
    pre-transposed), b_ref (1, tn) f32, o_ref (tm, tn) f32."""
    o_ref[...] = (
        lax.dot_general(
            x_ref[...], w_ref[...],
            dimension_numbers=(((1,), (0,)), ((), ())),
            preferred_element_type=jnp.float32,
        )
        + b_ref[...]
    ).astype(o_ref.dtype)


def _masked_linear_kernel_mk(x_ref, w_ref, b_ref, o_ref):
    """Multi K step: x_ref (tm, Inp) resident bf16, w_ref (tk, tn) bf16 stream,
    b_ref (1, tn) f32, o_ref (tm, tn) f32 (resident across k -> accumulator)."""
    k = pl.program_id(2)
    tk = w_ref.shape[0]
    start = pl.multiple_of(k * tk, tk)          # aligned dynamic slice of x
    xk = x_ref[:, pl.ds(start, tk)]
    part = lax.dot_general(
        xk, w_ref[...],
        dimension_numbers=(((1,), (0,)), ((), ())),
        preferred_element_type=jnp.float32,
    )

    @pl.when(k == 0)
    def _():
        o_ref[...] = part + b_ref[...]

    @pl.when(k > 0)
    def _():
        o_ref[...] += part


# --------------------------------------------------------------------------
# Helpers
# --------------------------------------------------------------------------
def _round_up(a, m):
    return (a + m - 1) // m * m


def _largest_divisor_leq(n, cap):
    cap = max(1, min(cap, n))
    for d in range(cap, 0, -1):
        if n % d == 0:
            return d
    return 1


def _vmem_cap_bytes():
    """Generation-aware VMEM budget (v7x: 64 MiB physical -> 32 MiB cap;
    v5e/v6e: 128 MiB physical -> 40 MiB cap)."""
    try:
        info = pltpu.get_tpu_info()
        phys = int(getattr(info, "vmem_capacity_bytes", 64 << 20))
    except Exception:
        phys = 64 << 20
    return min(40 << 20, max(16 << 20, phys // 2))


# --------------------------------------------------------------------------
# One-time parameter preparation (cache the result; weight/mask are static)
# --------------------------------------------------------------------------
def prepare_masked_linear(weight, mask, bias):
    """weight/mask: (Out, In) f32, bias: (Out,) f32.
    Returns cached, kernel-ready tensors:
      wp: (Inp, Outp) bf16 -- masked weight, transposed, padded to 128
      bp: (1, Outp) f32    -- padded bias
    """
    Out, In = weight.shape
    Inp = _round_up(In, 128)
    Outp = _round_up(Out, 128)
    w_eff_t = (weight * mask).T.astype(jnp.bfloat16)          # (In, Out)
    wp = jnp.zeros((Inp, Outp), jnp.bfloat16).at[:In, :Out].set(w_eff_t)
    bp = jnp.zeros((1, Outp), jnp.float32).at[0, :Out].set(bias.astype(jnp.float32))
    return {"wp": wp, "bp": bp, "In": In, "Out": Out, "Inp": Inp, "Outp": Outp}


# --------------------------------------------------------------------------
# Per-call wrapper
# --------------------------------------------------------------------------
def masked_linear_apply(x, prepared, *, target_tn=1024, target_tk=2048, max_tm=256):
    """x: (B, In) f32 -> (B, Out) f32. Uses cached prepared weights."""
    wp, bp = prepared["wp"], prepared["bp"]
    In, Out = prepared["In"], prepared["Out"]
    Inp, Outp = prepared["Inp"], prepared["Outp"]
    B = x.shape[0]

    # Rows tile: 16-row bf16 sublane packing; clamp so VMEM doesn't scale with B.
    tm = min(_round_up(B, 16), max_tm)
    Bp = _round_up(B, tm)

    vmem_cap = _vmem_cap_bytes()

    n_out_blk = Outp // 128
    n_in_blk = Inp // 128

    # Out tile: divisor of Outp (in 128-lane units); keep >=2 grid blocks along
    # Out when possible so both v7x TensorCores get work.
    cap_out = max(1, target_tn // 128)
    if n_out_blk >= 2:
        cap_out = min(cap_out, n_out_blk // 2)
    tn = 128 * _largest_divisor_leq(n_out_blk, cap_out)

    # In tile: divisor of Inp (no dead padding streamed).
    tk = 128 * _largest_divisor_leq(n_in_blk, max(1, target_tk // 128))

    def vmem_bytes(tm_, tn_, tk_):
        w = 2 * tk_ * tn_ * 2        # weight tiles, double-buffered bf16
        xr = tm_ * Inp * 2           # resident x row-block, bf16
        o = 2 * tm_ * tn_ * 4        # f32 output tile, double-buffered
        b = 2 * tn_ * 4              # bias tile
        return w + xr + o + b

    # Shrink tiles until the working set fits the generation-aware cap.
    while vmem_bytes(tm, tn, tk) > vmem_cap:
        if tk > 128:
            tk = 128 * _largest_divisor_leq(n_in_blk, max(1, (tk // 128) // 2))
        elif tn > 128:
            tn = 128 * _largest_divisor_leq(n_out_blk, max(1, (tn // 128) // 2))
        elif tm > 16:
            tm = max(16, tm // 2)
            Bp = _round_up(B, tm)
        else:
            break

    # Activation padding/cast (small, per-call; weights are already prepared).
    xp = jnp.zeros((Bp, Inp), jnp.bfloat16).at[:B, :In].set(x.astype(jnp.bfloat16))

    nk = Inp // tk
    grid_rows = Bp // tm
    grid_out = Outp // tn

    if nk == 1:
        # Single-K fast path: no accumulator, no init/finalize branches.
        out = pl.pallas_call(
            _masked_linear_kernel_1k,
            out_shape=jax.ShapeDtypeStruct((Bp, Outp), jnp.float32),
            grid_spec=pltpu.PrefetchScalarGridSpec(
                num_scalar_prefetch=0,
                grid=(grid_rows, grid_out),
                in_specs=[
                    pl.BlockSpec((tm, Inp), lambda i, j: (i, 0)),   # x (resident cols)
                    pl.BlockSpec((Inp, tn), lambda i, j: (0, j)),   # masked weight^T
                    pl.BlockSpec((1, tn), lambda i, j: (0, j)),     # bias
                ],
                out_specs=pl.BlockSpec((tm, tn), lambda i, j: (i, j)),
            ),
            compiler_params=pltpu.CompilerParams(
                dimension_semantics=("parallel", "parallel"),
                vmem_limit_bytes=vmem_cap,
            ),
        )(xp, wp, bp)
    else:
        # Multi-K path: accumulate directly into the resident f32 output block.
        out = pl.pallas_call(
            _masked_linear_kernel_mk,
            out_shape=jax.ShapeDtypeStruct((Bp, Outp), jnp.float32),
            grid_spec=pltpu.PrefetchScalarGridSpec(
                num_scalar_prefetch=0,
                grid=(grid_rows, grid_out, nk),
                in_specs=[
                    pl.BlockSpec((tm, Inp), lambda i, j, k: (i, 0)),  # x resident across j,k
                    pl.BlockSpec((tk, tn), lambda i, j, k: (k, j)),   # weight stream
                    pl.BlockSpec((1, tn), lambda i, j, k: (0, j)),    # bias
                ],
                out_specs=pl.BlockSpec((tm, tn), lambda i, j, k: (i, j)),
            ),
            compiler_params=pltpu.CompilerParams(
                dimension_semantics=("parallel", "parallel", "arbitrary"),
                vmem_limit_bytes=vmem_cap,
            ),
        )(xp, wp, bp)

    return out[:B, :Out].astype(x.dtype)


def customized_linear(x, weight, mask, bias, **kw):
    """Convenience one-shot path (prepares weights per call; prefer caching
    prepare_masked_linear() output for repeated calls)."""
    return masked_linear_apply(x, prepare_masked_linear(weight, mask, bias), **kw)


# --------------------------------------------------------------------------
# Parameter init matching CustomizedLinear.__init__ / reset_parameters
# --------------------------------------------------------------------------
def init_params(key, in_features, out_features):
    k_mask, k_w, k_b = jax.random.split(key, 3)
    mask_in_out = (jax.random.uniform(k_mask, (in_features, out_features))
                   > 0.5).astype(jnp.float32)
    mask = mask_in_out.T                                   # stored as (Out, In)
    stdv = 1.0 / math.sqrt(in_features)
    weight = jax.random.uniform(k_w, (out_features, in_features),
                                minval=-stdv, maxval=stdv)
    weight = weight * mask                                 # __init__ pre-mask
    bias = jax.random.uniform(k_b, (out_features,), minval=-stdv, maxval=stdv)
    return weight, mask, bias


if __name__ == "__main__":
    # --- small case matching the module (single-K fast path) ---
    key = jax.random.PRNGKey(0)
    batch, in_features, out_features = 8, 32, 64
    k_x, k_p = jax.random.split(key)
    x = jax.random.normal(k_x, (batch, in_features), dtype=jnp.float32)
    weight, mask, bias = init_params(k_p, in_features, out_features)

    prepared = prepare_masked_linear(weight, mask, bias)   # prepare once, reuse
    out = jax.block_until_ready(masked_linear_apply(x, prepared))

    w_eff = weight * mask
    ref_bf = (x.astype(jnp.bfloat16).astype(jnp.float32)
              @ w_eff.astype(jnp.bfloat16).astype(jnp.float32).T) + bias[None, :]
    ref_f32 = x @ w_eff.T + bias[None, :]
    assert out.shape == (batch, out_features)
    assert jnp.allclose(out, ref_bf, atol=2e-3, rtol=2e-3)
    assert jnp.allclose(out, ref_f32, atol=5e-2, rtol=5e-2)

    # --- odd shapes: Out=320 -> Outp=384 (3 Out blocks), In=640 -> one K tile ---
    batch2, in2, out2 = 16, 640, 320
    k_x2, k_p2 = jax.random.split(jax.random.PRNGKey(1))
    x2 = jax.random.normal(k_x2, (batch2, in2), dtype=jnp.float32)
    w2, m2, b2 = init_params(k_p2, in2, out2)
    prep2 = prepare_masked_linear(w2, m2, b2)
    out2_arr = jax.block_until_ready(masked_linear_apply(x2, prep2))
    we2 = w2 * m2
    ref2_bf = (x2.astype(jnp.bfloat16).astype(jnp.float32)
               @ we2.astype(jnp.bfloat16).astype(jnp.float32).T) + b2[None, :]
    assert out2_arr.shape == (batch2, out2)
    assert jnp.allclose(out2_arr, ref2_bf, atol=2e-3, rtol=2e-3)

    # --- force the multi-K accumulate-in-output path (small target_tk) ---
    batch3, in3, out3 = 16, 512, 384
    k_x3, k_p3 = jax.random.split(jax.random.PRNGKey(2))
    x3 = jax.random.normal(k_x3, (batch3, in3), dtype=jnp.float32)
    w3, m3, b3 = init_params(k_p3, in3, out3)
    prep3 = prepare_masked_linear(w3, m3, b3)
    out3_arr = jax.block_until_ready(
        masked_linear_apply(x3, prep3, target_tn=128, target_tk=256))
    we3 = w3 * m3
    ref3_bf = (x3.astype(jnp.bfloat16).astype(jnp.float32)
               @ we3.astype(jnp.bfloat16).astype(jnp.float32).T) + b3[None, :]
    assert out3_arr.shape == (batch3, out3)
    assert jnp.allclose(out3_arr, ref3_bf, atol=2e-3, rtol=2e-3)

    print("KERNEL_OK")
</pallas_src>

<mosaic_0001>
module attributes {stable_mosaic.version = 11 : i64} {
  func.func @_masked_linear_kernel_1k(%arg0: i32, %arg1: i32, %arg2: memref<16x128xbf16, #tpu.memory_space<vmem>>, %arg3: memref<128x128xbf16, #tpu.memory_space<vmem>>, %arg4: memref<1x128xf32, #tpu.memory_space<vmem>>, %arg5: memref<16x128xf32, #tpu.memory_space<vmem>>) attributes {dimension_semantics = [#tpu.dimension_semantics<parallel>, #tpu.dimension_semantics<parallel>], iteration_bounds = array<i64: 1, 1>, scalar_prefetch = 0 : i64, scratch_operands = 0 : i64, tpu.core_type = #tpu.core_type<tc>, window_params = [{transform_indices = @transform_0, window_bounds = array<i64: 16, 128>}, {transform_indices = @transform_1, window_bounds = array<i64: 128, 128>}, {transform_indices = @transform_2, window_bounds = array<i64: 1, 128>}, {transform_indices = @transform_3, window_bounds = array<i64: 16, 128>}]} {
    %c0 = arith.constant 0 : index
    %c0_0 = arith.constant 0 : index
    %0 = vector.load %arg2[%c0, %c0_0] : memref<16x128xbf16, #tpu.memory_space<vmem>>, vector<16x128xbf16>
    %c0_1 = arith.constant 0 : index
    %c0_2 = arith.constant 0 : index
    %1 = vector.load %arg3[%c0_1, %c0_2] : memref<128x128xbf16, #tpu.memory_space<vmem>>, vector<128x128xbf16>
    %cst = arith.constant dense<0.000000e+00> : vector<16x128xf32>
    %2 = tpu.matmul %0, %1, %cst {dimension_numbers = #tpu.dot_dimension_numbers<[1], [0], [0], [1], [0, 0, 1, 1], [], []>} : vector<16x128xbf16>, vector<128x128xbf16>, vector<16x128xf32> -> vector<16x128xf32>
    %c0_3 = arith.constant 0 : index
    %c0_4 = arith.constant 0 : index
    %3 = vector.load %arg4[%c0_3, %c0_4] : memref<1x128xf32, #tpu.memory_space<vmem>>, vector<1x128xf32>
    %4 = vector.broadcast %3 : vector<1x128xf32> to vector<16x128xf32>
    %5 = arith.addf %2, %4 : vector<16x128xf32>
    %c0_5 = arith.constant 0 : index
    %c0_6 = arith.constant 0 : index
    %6 = vector.load %arg5[%c0_5, %c0_6] : memref<16x128xf32, #tpu.memory_space<vmem>>, vector<16x128xf32>
    tpu.vector_store %arg5[%c0_5, %c0_6], %5 {strides = array<i32>} : memref<16x128xf32, #tpu.memory_space<vmem>>, vector<16x128xf32>,
    return
  }
  func.func @transform_0(%arg0: i32, %arg1: i32) -> (i32, i32) {
    %c0_i32 = arith.constant 0 : i32
    %c0_i32_0 = arith.constant 0 : i32
    return %arg0, %c0_i32 : i32, i32
  }
  func.func @transform_1(%arg0: i32, %arg1: i32) -> (i32, i32) {
    %c0_i32 = arith.constant 0 : i32
    %c0_i32_0 = arith.constant 0 : i32
    return %c0_i32, %arg1 : i32, i32
  }
  func.func @transform_2(%arg0: i32, %arg1: i32) -> (i32, i32) {
    %c0_i32 = arith.constant 0 : i32
    %c0_i32_0 = arith.constant 0 : i32
    return %c0_i32, %arg1 : i32, i32
  }
  func.func @transform_3(%arg0: i32, %arg1: i32) -> (i32, i32) {
    %c0_i32 = arith.constant 0 : i32
    return %arg0, %arg1 : i32, i32
  }
}

</mosaic_0001>

<llo_original>
// kernel: tpu_custom_call.1
$region0: #{tpu_custom_call.1}
  #allocation0 [shape = 'u32[]', space=smem, size = 0x4, offset = 0x4, fixed_abs, tag = 'smem constant byte address 0x4 - core index']
  #allocation1 [shape = 'u32[144,128]{1,0:T(1,128)}', space=vmem, size = 0x12000, scoped, tag = 'internal scratch']
  %s0 = inlined_call_operand.hbm [shape: bf16[16,128], index: 0, kind: input, shape index: {}]
  %s1 = inlined_call_operand.hbm [shape: bf16[128,128], index: 1, kind: input, shape index: {}]
  %s2 = inlined_call_operand.vmem [shape: f32[1,128], index: 2, kind: input, shape index: {}]
  %s3 = inlined_call_operand.hbm [shape: f32[16,128], index: 3, kind: output, shape index: {}]
  %s4 = sld [smem:[#allocation0]]
  $region30: #{tpu_custom_call.1} parent=0
    _
  %s6 = ssub.s32 1, %s4
  %s7 = scalar_select 0, %s6, %s4
  $region1: #{tpu_custom_call.1} parent=0
    #allocation2 [shape = 'u8[4096]{0}', space=vmem, size = 0x1000, scoped, tag = 'input window, operand 0, single buffered']
    #allocation3 [shape = 's32[1]{0}', space=sflag, size = 0x4, scoped, tag = 'scoped memory for tpu_custom_call.1']
    #allocation4 [shape = 's32[1]{0}', space=sflag, size = 0x4, scoped, tag = 'scoped memory for tpu_custom_call.1']
    #allocation5 [shape = 'u8[32768]{0}', space=vmem, size = 0x8000, scoped, tag = 'input window, operand 1, single buffered']
    #allocation6 [shape = 's32[1]{0}', space=sflag, size = 0x4, scoped, tag = 'scoped memory for tpu_custom_call.1']
    #allocation7 [shape = 'u8[8192]{0}', space=vmem, size = 0x2000, scoped, tag = 'output window, operand 0, single buffered']
    %8 = vsyncpa [#allocation3], 0
    %9 = vsyncpa [#allocation6], 0
    %10 = vsyncpa [#allocation4], 0
    // Predicated region
    $region2: #{tpu_custom_call.1} parent=1 // pred_check
      _
    $region3: #{tpu_custom_call.1} parent=1 // pred_check_branch
      %12 = sbr.rel (0) target = $region5
    $region4: #{tpu_custom_call.1} parent=1 // pred_region
      %s14 = ssub.s32 128, 128
      %15 = vsyncadd [#allocation3], %s14
      %s16 = sshll.u32 [#allocation2], 4
      %s17 = int_to_ptr.vmem [resolvable:$true] %s16
      %22 = dma.hbm_to_vmem [thread:$0]  %s0, 128, %s17, [#allocation3], 64, 64, 4
    $region5: #{tpu_custom_call.1} parent=1 // pred_fallthru
      _
    // Predicated region
    $region6: #{tpu_custom_call.1} parent=1 // pred_check
      _
    $region7: #{tpu_custom_call.1} parent=1 // pred_check_branch
      %24 = sbr.rel (0) target = $region9
    $region8: #{tpu_custom_call.1} parent=1 // pred_region
      %s26 = ssub.s32 1024, 1024
      %27 = vsyncadd [#allocation6], %s26
      %s28 = sshll.u32 [#allocation5], 4
      %s29 = int_to_ptr.vmem [resolvable:$true] %s28
      %34 = dma.hbm_to_vmem [thread:$0]  %s1, 1024, %s29, [#allocation6], 64, 64, 4
    $region9: #{tpu_custom_call.1} parent=1 // pred_fallthru
      _
    // Predicated region
    $region10: #{tpu_custom_call.1} parent=1 // pred_check
      _
    $region11: #{tpu_custom_call.1} parent=1 // pred_check_branch
      %36 = sbr.rel (0) target = $region13
    $region12: #{tpu_custom_call.1} parent=1 // pred_region
      _
    $region13: #{tpu_custom_call.1} parent=1 // pred_fallthru
      _
    // Predicated region
    $region14: #{tpu_custom_call.1} parent=1 // pred_check
      _
    $region15: #{tpu_custom_call.1} parent=1 // pred_check_branch
      %38 = sbr.rel (0) target = $region17
    $region16: #{tpu_custom_call.1} parent=1 // pred_region
      %39 = dma.done [#allocation3], 128
    $region17: #{tpu_custom_call.1} parent=1 // pred_fallthru
      _
    // Predicated region
    $region18: #{tpu_custom_call.1} parent=1 // pred_check
      _
    $region19: #{tpu_custom_call.1} parent=1 // pred_check_branch
      %41 = sbr.rel (0) target = $region21
    $region20: #{tpu_custom_call.1} parent=1 // pred_region
      %42 = dma.done [#allocation6], 1024
    $region21: #{tpu_custom_call.1} parent=1 // pred_fallthru
      _
    %v44 = vld [vmem:[#allocation2] sm:$0xf]
    %v45 = vld [vmem:[#allocation2 + $0x4] sm:$0xf]
    %v46 = vld [vmem:[#allocation5] sm:$0xf]
    %v47 = vld [vmem:[#allocation5 + $0x4] sm:$0xf]
    %v48 = vld [vmem:[#allocation5 + $0x8] sm:$0xf]
    %v49 = vld [vmem:[#allocation5 + $0xc] sm:$0xf]
    %v50 = vld [vmem:[#allocation5 + $0x10] sm:$0xf]
    %v51 = vld [vmem:[#allocation5 + $0x14] sm:$0xf]
    %v52 = vld [vmem:[#allocation5 + $0x18] sm:$0xf]
    %v53 = vld [vmem:[#allocation5 + $0x1c] sm:$0xf]
    %v54 = vld [vmem:[#allocation5 + $0x20] sm:$0xf]
    %v55 = vld [vmem:[#allocation5 + $0x24] sm:$0xf]
    %v56 = vld [vmem:[#allocation5 + $0x28] sm:$0xf]
    %v57 = vld [vmem:[#allocation5 + $0x2c] sm:$0xf]
    %v58 = vld [vmem:[#allocation5 + $0x30] sm:$0xf]
    %v59 = vld [vmem:[#allocation5 + $0x34] sm:$0xf]
    %v60 = vld [vmem:[#allocation5 + $0x38] sm:$0xf]
    %v61 = vld [vmem:[#allocation5 + $0x3c] sm:$0xf]
    %v62 = vld [vmem:[%s2] sm:$0x1]
    %v64 = vlaneseq
    %v65 = vshrl.u32 %v64, 7
    %v66 = vsub.s32 0, %v65
    %v67 = vrot.slane %v62, %v66
    %v71 = vunpack.c.l.b16 %v44
    %v72 = vunpack.c.l.b16 %v45
    %v73 = vpack.c.b16 %v72, %v71
    %v91 = vunpack.c.l.b16 %v46
    %v92 = vunpack.c.l.b16 %v47
    %v93 = vunpack.c.l.b16 %v48
    %v94 = vunpack.c.l.b16 %v49
    %v95 = vunpack.c.l.b16 %v50
    %v96 = vunpack.c.l.b16 %v51
    %v97 = vunpack.c.l.b16 %v52
    %v98 = vunpack.c.l.b16 %v53
    %v99 = vunpack.c.l.b16 %v54
    %v100 = vunpack.c.l.b16 %v55
    %v101 = vunpack.c.l.b16 %v56
    %v102 = vunpack.c.l.b16 %v57
    %v103 = vunpack.c.l.b16 %v58
    %v104 = vunpack.c.l.b16 %v59
    %v105 = vunpack.c.l.b16 %v60
    %v106 = vunpack.c.l.b16 %v61
    %v107 = vpack.c.b16 %v92, %v91
    %v108 = vpack.c.b16 %v94, %v93
    %v109 = vpack.c.b16 %v96, %v95
    %v110 = vpack.c.b16 %v98, %v97
    %v111 = vpack.c.b16 %v100, %v99
    %v112 = vpack.c.b16 %v102, %v101
    %v113 = vpack.c.b16 %v104, %v103
    %v114 = vpack.c.b16 %v106, %v105
    %123 = vmatprep.subr.bf16.mxu0 0
    %124 = vmatpush1.bf16.msra.mxu0 %v107
    %125 = vmatprep.subr.bf16.mxu0 0
    %126 = vmatpush1.bf16.msra.mxu0 %v108
    %127 = vmatprep.subr.bf16.mxu0 0
    %128 = vmatpush1.bf16.msra.mxu0 %v109
    %129 = vmatprep.subr.bf16.mxu0 0
    %130 = vmatpush1.bf16.msra.mxu0 %v110
    %131 = vmatprep.subr.bf16.mxu0 0
    %132 = vmatpush1.bf16.msra.mxu0 %v111
    %133 = vmatprep.subr.bf16.mxu0 0
    %134 = vmatpush1.bf16.msra.mxu0 %v112
    %135 = vmatprep.subr.bf16.mxu0 0
    %136 = vmatpush1.bf16.msra.mxu0 %v113
    %137 = vmatprep.subr.bf16.mxu0 0
    %138 = vmatpush1.bf16.msra.mxu0 %v114
    %139 = vmatprep.subr.bf16.mxu0 0
    %140 = vmatpush1.bf16.msra.mxu0 0
    %141 = vmatprep.subr.bf16.mxu0 0
    %142 = vmatpush1.bf16.msra.mxu0 0
    %143 = vmatprep.subr.bf16.mxu0 0
    %144 = vmatpush1.bf16.msra.mxu0 0
    %145 = vmatprep.subr.bf16.mxu0 0
    %146 = vmatpush1.bf16.msra.mxu0 0
    %147 = vmatprep.subr.bf16.mxu0 0
    %148 = vmatpush1.bf16.msra.mxu0 0
    %149 = vmatprep.subr.bf16.mxu0 0
    %150 = vmatpush1.bf16.msra.mxu0 0
    %151 = vmatprep.subr.bf16.mxu0 0
    %152 = vmatpush1.bf16.msra.mxu0 0
    %153 = vmatprep.subr.bf16.mxu0 0
    %154 = vmatpush1.bf16.msra.mxu0 0
    %155 = vmatprep.mubr.bf16.mxu0 0
    %156 = vmatmul.mubr.bf16.gmra.mrb[0].mxu0 %v73
    %v157 = vpop.f32.mrb[0].mxu0
    %v158 = vadd.f32 %v67, %v157
    %v159 = vpop.f32.mrb[0].mxu0
    %v160 = vpop.f32.mrb[0].mxu0
    %v161 = vadd.f32 %v67, %v160
    %v162 = vpop.f32.mrb[0].mxu0
    %163 = vdwg.mxu0
    %164 = vst [vmem:[#allocation7] sm:$0xff] %v158
    %165 = vst [vmem:[#allocation7 + $0x8] sm:$0xff] %v161
    // Predicated region
    $region22: #{tpu_custom_call.1} parent=1 // pred_check
      _
    $region23: #{tpu_custom_call.1} parent=1 // pred_check_branch
      %167 = sbr.rel (0) target = $region25
    $region24: #{tpu_custom_call.1} parent=1 // pred_region
      %s169 = ssub.s32 256, 256
      %170 = vsyncadd [#allocation4], %s169
      %s171 = sshll.u32 [#allocation7], 4
      %s172 = int_to_ptr.vmem [resolvable:$true] %s171
      %177 = dma.vmem_to_hbm [thread:$0]  %s172, 256, %s3, [#allocation4], 128, 128, 8
    $region25: #{tpu_custom_call.1} parent=1 // pred_fallthru
      _
    // Predicated region
    $region26: #{tpu_custom_call.1} parent=1 // pred_check
      _
    $region27: #{tpu_custom_call.1} parent=1 // pred_check_branch
      %179 = sbr.rel (0) target = $region29
    $region28: #{tpu_custom_call.1} parent=1 // pred_region
      %180 = dma.done [#allocation4], 256
    $region29: #{tpu_custom_call.1} parent=1 // pred_fallthru
      _
    %181 = vsyncpa [#allocation3], 1
    %182 = vsyncpa [#allocation6], 1
    %183 = vsyncpa [#allocation4], 1

</llo_original>
